<compile_context>
chip_gen: v6e
topology: v6e:2x2x1
jax: 0.10.0
libtpu: 0.0.40
codegen_flags: <defaults>
</compile_context>

<pallas_src>
import jax
import jax.numpy as jnp
from jax.experimental import pallas as pl
from jax.experimental.pallas import tpu as pltpu


def linear_kernel(w_ref, b_ref, xT_ref, o_ref):
    """y[0, :] = sum_k w[k] * xT[k, :] + b.

    xT_ref: (F, T) f32 VMEM tile (features on sublanes, batch on lanes).
    w_ref:  (F,)  f32 in SMEM (read as scalars).
    b_ref:  (1,)  f32 in SMEM.
    o_ref:  (1, T) f32 VMEM tile (lane-dense output).
    """
    xT = xT_ref[...]                      # (F, T)
    f_in = xT.shape[0]
    acc = xT[0:1, :] * w_ref[0]           # VPU scalar * row
    for k in range(1, f_in):              # tiny static unroll (F = 5)
        acc = acc + xT[k:k + 1, :] * w_ref[k]
    o_ref[...] = (acc + b_ref[0]).astype(o_ref.dtype)


def lol_win_rate_predictor(x, w, b, *, max_lane_tile=65536):
    """Forward of nn.Linear(5, 1): y = x @ w.T + b.

    x: (B, F) f32 (PyTorch layout), w: (1, F) f32, b: (1,) f32.
    Returns (B, 1) f32, identical to the PyTorch module.

    max_lane_tile: cap on lanes per grid step (multiple of 128).  65536 fits
    every generation's default scoped VMEM (v5e 16 MiB, v6e/v7x 32 MiB); on
    v6e a larger cap (e.g. 262144) pushes per-step overhead below 5%.
    """
    B, F = x.shape
    Fo = w.shape[0]
    assert Fo == 1 and w.shape[1] == F and b.shape == (Fo,)
    assert max_lane_tile % 128 == 0

    w_row = w.reshape(F).astype(jnp.float32)   # (F,) scalars -> SMEM
    b_vec = b.reshape(Fo).astype(jnp.float32)  # (1,) scalar  -> SMEM
    # TODO(synk): store/produce x feature-major (F, B) upstream so this
    # relayout disappears entirely; it is the only remaining extra HBM pass.
    xT = x.T                                   # (F, B): batch on lanes

    smem_spec = pl.BlockSpec(memory_space=pltpu.MemorySpace.SMEM)
    vmem_spec = pl.BlockSpec(memory_space=pltpu.MemorySpace.VMEM)

    itemsize = jnp.dtype(x.dtype).itemsize
    cost = pl.CostEstimate(
        flops=2 * F * B,
        transcendentals=0,
        bytes_accessed=F * B * itemsize + B * itemsize + (F + 1) * 4,
    )

    if B <= max_lane_tile:
        # Single block, no grid: whole (F, B) tile in VMEM, scalars in SMEM.
        out_1b = pl.pallas_call(
            linear_kernel,
            out_shape=jax.ShapeDtypeStruct((1, B), x.dtype),
            in_specs=[smem_spec, smem_spec, vmem_spec],
            out_specs=vmem_spec,
            cost_estimate=cost,
        )(w_row, b_vec, xT)
    else:
        # Gridded path: no pad, no slice.  n_tiles >= 2 here, and the lane
        # tile is rebalanced (128-aligned, <= max_lane_tile) so grid steps are
        # near-equal — keeps both v7x TensorCores loaded.  The last tile may
        # overhang B; its out-of-bounds output lanes are masked on writeback.
        n_tiles = pl.cdiv(B, max_lane_tile)
        lane_tile = 128 * pl.cdiv(pl.cdiv(B, n_tiles), 128)
        n_tiles = pl.cdiv(B, lane_tile)
        out_1b = pl.pallas_call(
            linear_kernel,
            out_shape=jax.ShapeDtypeStruct((1, B), x.dtype),
            grid=(n_tiles,),
            in_specs=[
                smem_spec,
                smem_spec,
                pl.BlockSpec((F, lane_tile), lambda i: (0, i)),
            ],
            out_specs=pl.BlockSpec((1, lane_tile), lambda i: (0, i)),
            compiler_params=pltpu.CompilerParams(
                dimension_semantics=("parallel",)
            ),
            cost_estimate=cost,
        )(w_row, b_vec, xT)

    return out_1b.T  # (B, 1)


if __name__ == "__main__":
    key = jax.random.PRNGKey(0)
    k_x, k_x2, k_w, k_b = jax.random.split(key, 4)

    F_IN, F_OUT = 5, 1

    # Deterministic params (mimics nn.Linear default init U(-1/sqrt(F), 1/sqrt(F))).
    bound = 1.0 / jnp.sqrt(jnp.float32(F_IN))
    w = jax.random.uniform(k_w, (F_OUT, F_IN), jnp.float32, -bound, bound)
    b = jax.random.uniform(k_b, (F_OUT,), jnp.float32, -bound, bound)

    # Small-batch path (single block, no grid).
    B = 8
    x = jax.random.normal(k_x, (B, F_IN), jnp.float32)
    out = jax.block_until_ready(lol_win_rate_predictor(x, w, b))
    ref = x @ w.T + b
    assert out.shape == (B, F_OUT)
    assert jnp.allclose(out, ref, atol=1e-5, rtol=1e-5)

    # Gridded path with a small tile cap so the test exercises the parallel
    # grid and the ragged (overhanging, unpadded) last tile.
    B2 = 1300  # not a multiple of the tile -> last block overhangs
    x2 = jax.random.normal(k_x2, (B2, F_IN), jnp.float32)
    out2 = jax.block_until_ready(
        lol_win_rate_predictor(x2, w, b, max_lane_tile=512)
    )
    ref2 = x2 @ w.T + b
    assert out2.shape == (B2, F_OUT)
    assert jnp.allclose(out2, ref2, atol=1e-5, rtol=1e-5)

    print("KERNEL_OK")
</pallas_src>

<mosaic_0001>
module attributes {stable_mosaic.version = 11 : i64} {
  func.func @linear_kernel(%arg0: memref<5xf32, #tpu.memory_space<smem>>, %arg1: memref<1xf32, #tpu.memory_space<smem>>, %arg2: memref<5x8xf32, #tpu.memory_space<vmem>>, %arg3: memref<1x8xf32, #tpu.memory_space<vmem>>) attributes {dimension_semantics = [], scalar_prefetch = 0 : i64, scratch_operands = 0 : i64, tpu.core_type = #tpu.core_type<tc>} {
    %c0 = arith.constant 0 : index
    %c0_0 = arith.constant 0 : index
    %0 = vector.load %arg2[%c0, %c0_0] : memref<5x8xf32, #tpu.memory_space<vmem>>, vector<5x8xf32>
    %1 = vector.extract_strided_slice %0 {offsets = [0, 0], sizes = [1, 8], strides = [1, 1]} : vector<5x8xf32> to vector<1x8xf32>
    %c0_1 = arith.constant 0 : index
    %2 = memref.load %arg0[%c0_1] : memref<5xf32, #tpu.memory_space<smem>>
    %3 = vector.broadcast %2 : f32 to vector<1x8xf32>
    %4 = arith.mulf %1, %3 : vector<1x8xf32>
    %5 = vector.extract_strided_slice %0 {offsets = [1, 0], sizes = [1, 8], strides = [1, 1]} : vector<5x8xf32> to vector<1x8xf32>
    %c1 = arith.constant 1 : index
    %6 = memref.load %arg0[%c1] : memref<5xf32, #tpu.memory_space<smem>>
    %7 = vector.broadcast %6 : f32 to vector<1x8xf32>
    %8 = arith.mulf %5, %7 : vector<1x8xf32>
    %9 = arith.addf %4, %8 : vector<1x8xf32>
    %10 = vector.extract_strided_slice %0 {offsets = [2, 0], sizes = [1, 8], strides = [1, 1]} : vector<5x8xf32> to vector<1x8xf32>
    %c2 = arith.constant 2 : index
    %11 = memref.load %arg0[%c2] : memref<5xf32, #tpu.memory_space<smem>>
    %12 = vector.broadcast %11 : f32 to vector<1x8xf32>
    %13 = arith.mulf %10, %12 : vector<1x8xf32>
    %14 = arith.addf %9, %13 : vector<1x8xf32>
    %15 = vector.extract_strided_slice %0 {offsets = [3, 0], sizes = [1, 8], strides = [1, 1]} : vector<5x8xf32> to vector<1x8xf32>
    %c3 = arith.constant 3 : index
    %16 = memref.load %arg0[%c3] : memref<5xf32, #tpu.memory_space<smem>>
    %17 = vector.broadcast %16 : f32 to vector<1x8xf32>
    %18 = arith.mulf %15, %17 : vector<1x8xf32>
    %19 = arith.addf %14, %18 : vector<1x8xf32>
    %20 = vector.extract_strided_slice %0 {offsets = [4, 0], sizes = [1, 8], strides = [1, 1]} : vector<5x8xf32> to vector<1x8xf32>
    %c4 = arith.constant 4 : index
    %21 = memref.load %arg0[%c4] : memref<5xf32, #tpu.memory_space<smem>>
    %22 = vector.broadcast %21 : f32 to vector<1x8xf32>
    %23 = arith.mulf %20, %22 : vector<1x8xf32>
    %24 = arith.addf %19, %23 : vector<1x8xf32>
    %c0_2 = arith.constant 0 : index
    %25 = memref.load %arg1[%c0_2] : memref<1xf32, #tpu.memory_space<smem>>
    %26 = vector.broadcast %25 : f32 to vector<1x8xf32>
    %27 = arith.addf %24, %26 : vector<1x8xf32>
    %c0_3 = arith.constant 0 : index
    %c0_4 = arith.constant 0 : index
    %28 = vector.load %arg3[%c0_3, %c0_4] : memref<1x8xf32, #tpu.memory_space<vmem>>, vector<1x8xf32>
    tpu.vector_store %arg3[%c0_3, %c0_4], %27 {strides = array<i32>} : memref<1x8xf32, #tpu.memory_space<vmem>>, vector<1x8xf32>,
    return
  }
}

</mosaic_0001>

<llo_original>
// kernel: tpu_custom_call.1
$region0: #{tpu_custom_call.1}
  #allocation0 [shape = 'u32[]', space=smem, size = 0x4, offset = 0x4, fixed_abs, tag = 'smem constant byte address 0x4 - core index']
  #allocation1 [shape = 'u32[144,128]{1,0:T(1,128)}', space=vmem, size = 0x12000, scoped, tag = 'internal scratch']
  #allocation2 [shape = 'f32[1]{0:T(128)S(6)}', space=smem, size = 0x200, scoped, tag = 'scoped memory for tpu_custom_call.1']
  %s0 = inlined_call_operand.vmem [shape: f32[5], index: 0, kind: input, shape index: {}]
  %s1 = inlined_call_operand.<no memory space> [shape: f32[1], index: 1, kind: input, shape index: {}]
  %s2 = inlined_call_operand.hbm [shape: f32[5,8], index: 2, kind: input, shape index: {}]
  %s3 = inlined_call_operand.hbm [shape: f32[1,8], index: 3, kind: output, shape index: {}]
  %s4 = sld [smem:[#allocation0]]
  $region30: #{tpu_custom_call.1} parent=0
    _
  %s6 = ssub.s32 1, %s4
  %s7 = scalar_select 0, %s6, %s4
  %8 = sst [smem:[#allocation2]] %s1
  $region1: #{tpu_custom_call.1} parent=0
    #allocation3 [shape = 'u8[512]{0}', space=smem, size = 0x200, scoped, tag = 'input window, operand 0, single buffered']
    #allocation4 [shape = 's32[1]{0}', space=sflag, size = 0x4, scoped, tag = 'scoped memory for tpu_custom_call.1']
    #allocation5 [shape = 's32[1]{0}', space=sflag, size = 0x4, scoped, tag = 'scoped memory for tpu_custom_call.1']
    #allocation6 [shape = 's32[1]{0}', space=sflag, size = 0x4, scoped, tag = 'scoped memory for tpu_custom_call.1']
    #allocation7 [shape = 'u8[4096]{0}', space=vmem, size = 0x1000, scoped, tag = 'input window, operand 2, single buffered']
    #allocation8 [shape = 'u8[512]{0}', space=vmem, size = 0x400, scoped, tag = 'output window, operand 0, single buffered']
    %9 = vsyncpa [#allocation6], 0
    %10 = vsyncpa [#allocation4], 0
    %11 = vsyncpa [#allocation5], 0
    // Predicated region
    $region2: #{tpu_custom_call.1} parent=1 // pred_check
      _
    $region3: #{tpu_custom_call.1} parent=1 // pred_check_branch
      %13 = sbr.rel (0) target = $region5
    $region4: #{tpu_custom_call.1} parent=1 // pred_region
      %s15 = ssub.s32 16, 16
      %16 = vsyncadd [#allocation6], %s15
      %s18 = sshll.u32 %s0, 4
      %s19 = int_to_ptr.vmem [resolvable:$true] %s18
      %21 = dma.vmem_to_smem %s19, 16, [#allocation3], [#allocation6]
    $region5: #{tpu_custom_call.1} parent=1 // pred_fallthru
      _
    // Predicated region
    $region6: #{tpu_custom_call.1} parent=1 // pred_check
      _
    $region7: #{tpu_custom_call.1} parent=1 // pred_check_branch
      %23 = sbr.rel (0) target = $region9
    $region8: #{tpu_custom_call.1} parent=1 // pred_region
      _
    $region9: #{tpu_custom_call.1} parent=1 // pred_fallthru
      _
    // Predicated region
    $region10: #{tpu_custom_call.1} parent=1 // pred_check
      _
    $region11: #{tpu_custom_call.1} parent=1 // pred_check_branch
      %25 = sbr.rel (0) target = $region13
    $region12: #{tpu_custom_call.1} parent=1 // pred_region
      %s27 = ssub.s32 128, 128
      %28 = vsyncadd [#allocation4], %s27
      %s30 = sshll.u32 [#allocation7], 4
      %s31 = int_to_ptr.vmem [resolvable:$true] %s30
      %33 = dma.hbm_to_vmem [thread:$0]  %s2, 128, %s31, [#allocation4]
    $region13: #{tpu_custom_call.1} parent=1 // pred_fallthru
      _
    // Predicated region
    $region14: #{tpu_custom_call.1} parent=1 // pred_check
      _
    $region15: #{tpu_custom_call.1} parent=1 // pred_check_branch
      %35 = sbr.rel (0) target = $region17
    $region16: #{tpu_custom_call.1} parent=1 // pred_region
      %36 = dma.done [#allocation6], 16
    $region17: #{tpu_custom_call.1} parent=1 // pred_fallthru
      _
    // Predicated region
    $region18: #{tpu_custom_call.1} parent=1 // pred_check
      _
    $region19: #{tpu_custom_call.1} parent=1 // pred_check_branch
      %38 = sbr.rel (0) target = $region21
    $region20: #{tpu_custom_call.1} parent=1 // pred_region
      %39 = dma.done [#allocation4], 128
    $region21: #{tpu_custom_call.1} parent=1 // pred_fallthru
      _
    %40 = sfence
    %v41 = vld [vmem:[#allocation7] sm:$0x1f]
    %s42 = sld [smem:[#allocation3]]
    %v43 = vstv %s42
    %v44 = vmul.f32 %v41, %v43
    %s45 = sld [smem:[#allocation3 + $0x1]]
    %v46 = vstv %s45
    %v47 = vmul.f32 %v41, %v46
    %v49 = vrot.slane %v47, 1
    %v51 = vadd.f32 %v44, %v49
    %s52 = sld [smem:[#allocation3 + $0x2]]
    %v53 = vstv %s52
    %v54 = vmul.f32 %v41, %v53
    %v56 = vrot.slane %v54, 2
    %v58 = vadd.f32 %v51, %v56
    %s59 = sld [smem:[#allocation3 + $0x3]]
    %v60 = vstv %s59
    %v61 = vmul.f32 %v41, %v60
    %v63 = vrot.slane %v61, 3
    %v65 = vadd.f32 %v58, %v63
    %s66 = sld [smem:[#allocation3 + $0x4]]
    %v67 = vstv %s66
    %v68 = vmul.f32 %v41, %v67
    %v70 = vrot.slane %v68, 4
    %v72 = vadd.f32 %v65, %v70
    %s73 = sld [smem:[#allocation2]]
    %v74 = vstv %s73
    %v75 = vadd.f32 %v72, %v74
    %vm76 = vcmask 57344
    %77 = vst.msk [vmem:[#allocation8] sm:$0x1] %vm76, %v75
    // Predicated region
    $region22: #{tpu_custom_call.1} parent=1 // pred_check
      _
    $region23: #{tpu_custom_call.1} parent=1 // pred_check_branch
      %79 = sbr.rel (0) target = $region25
    $region24: #{tpu_custom_call.1} parent=1 // pred_region
      %s81 = ssub.s32 16, 16
      %82 = vsyncadd [#allocation5], %s81
      %s84 = sshll.u32 [#allocation8], 4
      %s85 = int_to_ptr.vmem [resolvable:$true] %s84
      %87 = dma.vmem_to_hbm [thread:$0]  %s85, 16, %s3, [#allocation5]
    $region25: #{tpu_custom_call.1} parent=1 // pred_fallthru
      _
    // Predicated region
    $region26: #{tpu_custom_call.1} parent=1 // pred_check
      _
    $region27: #{tpu_custom_call.1} parent=1 // pred_check_branch
      %89 = sbr.rel (0) target = $region29
    $region28: #{tpu_custom_call.1} parent=1 // pred_region
      %90 = dma.done [#allocation5], 16
    $region29: #{tpu_custom_call.1} parent=1 // pred_fallthru
      _
    %91 = vsyncpa [#allocation4], 1
    %92 = vsyncpa [#allocation5], 1
    %93 = vsyncpa [#allocation6], 1

</llo_original>
